<compile_context>
chip_gen: v7x
topology: tpu7x:2x2x1
jax: 0.10.0
libtpu: 0.0.40
codegen_flags: <defaults>
</compile_context>

<pallas_src>
from functools import partial

import jax
import jax.numpy as jnp
from jax.experimental import pallas as pl
from jax.experimental.pallas import tpu as pltpu


def _soft_q_kernel(obs_ref, act_ref, w1o_ref, w1a_ref, b1_ref, w2_ref, b2_ref,
                   w3_ref, b3_ref, out_ref):
    # In-kernel cast (VPU, trivial) — avoids a wrapper-side cast/concat HBM roundtrip.
    xo = obs_ref[...].astype(jnp.bfloat16)                             # (TB, OBS)
    xa = act_ref[...].astype(jnp.bfloat16)                             # (TB, ACT)

    # fc1 + ReLU: split-K matmul (== cat([obs, act]) @ W1), bf16 operands, f32 accum.
    h1 = (jnp.dot(xo, w1o_ref[...], preferred_element_type=jnp.float32)
          + jnp.dot(xa, w1a_ref[...], preferred_element_type=jnp.float32)
          + b1_ref[...])
    h1 = jnp.maximum(h1, 0.0).astype(jnp.bfloat16)                     # (TB, H) bf16

    # fc2 + ReLU.
    h2 = jnp.dot(h1, w2_ref[...], preferred_element_type=jnp.float32) + b2_ref[...]
    h2 = jnp.maximum(h2, 0.0)                                          # (TB, H) f32

    # fc3: H -> 1 as VPU multiply + XLU lane reduction (no N=1 MXU matmul).
    q = jnp.sum(h2 * w3_ref[...], axis=-1, keepdims=True) + b3_ref[0, 0]
    out_ref[...] = q.astype(out_ref.dtype)                             # (TB, 1)


def _round_up(x, m):
    return (x + m - 1) // m * m


@partial(jax.jit, static_argnames=("batch_tile",))
def soft_q_forward(obs, act, params, *, batch_tile=256):
    """obs: (B, OBS) f32, act: (B, ACT) f32 -> (B, 1) f32.

    batch_tile: 256 is a good default for v6e/v7x; 128 suits v5e.
    """
    B, obs_dim = obs.shape
    act_dim = act.shape[1]
    hidden = params["w1"].shape[1]

    # Batch tiling: sublane-aligned (multiple of 8), capped at batch_tile.
    tb = min(batch_tile, _round_up(B, 8))
    padded_b = _round_up(B, tb)
    if padded_b != B:
        pad = padded_b - B
        obs = jnp.pad(obs, ((0, pad), (0, 0)))
        act = jnp.pad(act, ((0, pad), (0, 0)))

    # Weights: bf16 (halves DMA, native MXU dtype); W1 split to match the split-K fc1.
    w1o = params["w1"][:obs_dim].astype(jnp.bfloat16)            # (obs_dim, hidden)
    w1a = params["w1"][obs_dim:].astype(jnp.bfloat16)            # (act_dim, hidden)
    w2 = params["w2"].astype(jnp.bfloat16)                       # (hidden, hidden)
    b1 = params["b1"].reshape(1, hidden).astype(jnp.float32)
    b2 = params["b2"].reshape(1, hidden).astype(jnp.float32)
    w3 = params["w3"].reshape(1, hidden).astype(jnp.float32)     # pre-transposed row
    b3 = params["b3"].reshape(1, 1).astype(jnp.float32)          # scalar -> SMEM

    pinned = lambda shape: pl.BlockSpec(shape, lambda i: (0, 0))  # VMEM-resident weights

    out = pl.pallas_call(
        _soft_q_kernel,
        out_shape=jax.ShapeDtypeStruct((padded_b, 1), jnp.float32),
        grid=(padded_b // tb,),
        in_specs=[
            pl.BlockSpec((tb, obs_dim), lambda i: (i, 0)),          # obs: batch-tiled
            pl.BlockSpec((tb, act_dim), lambda i: (i, 0)),          # act: batch-tiled
            pinned((obs_dim, hidden)),                              # W1[:obs_dim]
            pinned((act_dim, hidden)),                              # W1[obs_dim:]
            pinned((1, hidden)),                                    # b1
            pinned((hidden, hidden)),                               # W2
            pinned((1, hidden)),                                    # b2
            pinned((1, hidden)),                                    # w3 (row)
            pl.BlockSpec(memory_space=pltpu.MemorySpace.SMEM),      # b3 scalar
        ],
        out_specs=pl.BlockSpec((tb, 1), lambda i: (i, 0)),
        compiler_params=pltpu.CompilerParams(
            dimension_semantics=("parallel",),   # megacore-shard the batch axis (v7x)
            vmem_limit_bytes=4 << 20,            # truthful budget (~1 MiB used)
        ),
    )(obs, act, w1o, w1a, b1, w2, b2, w3, b3)

    return out[:B]


def init_params(key, obs_dim, act_dim, hidden=256):
    """Deterministic init mimicking PyTorch nn.Linear (uniform +/- 1/sqrt(fan_in)).

    Weights stored as (in_features, out_features)."""
    in1 = obs_dim + act_dim
    ks = jax.random.split(key, 6)

    def lin(kw, kb, fan_in, fan_out):
        bound = 1.0 / jnp.sqrt(jnp.asarray(fan_in, jnp.float32))
        w = jax.random.uniform(kw, (fan_in, fan_out), jnp.float32, -bound, bound)
        b = jax.random.uniform(kb, (fan_out,), jnp.float32, -bound, bound)
        return w, b

    w1, b1 = lin(ks[0], ks[1], in1, hidden)
    w2, b2 = lin(ks[2], ks[3], hidden, hidden)
    w3, b3 = lin(ks[4], ks[5], hidden, 1)
    return dict(w1=w1, b1=b1, w2=w2, b2=b2, w3=w3, b3=b3)


def reference_forward_f32(obs, act, p):
    x = jnp.concatenate([obs, act], axis=1)
    x = jnp.maximum(x @ p["w1"] + p["b1"], 0.0)
    x = jnp.maximum(x @ p["w2"] + p["b2"], 0.0)
    return x @ p["w3"] + p["b3"]


def reference_forward_bf16(obs, act, p):
    """Pure-JAX reference mirroring the kernel's precision (bf16 operands, f32 accum)."""
    x = jnp.concatenate([obs, act], axis=1).astype(jnp.bfloat16)
    w1 = p["w1"].astype(jnp.bfloat16)
    w2 = p["w2"].astype(jnp.bfloat16)
    h1 = jnp.maximum(jnp.dot(x, w1, preferred_element_type=jnp.float32) + p["b1"], 0.0)
    h1 = h1.astype(jnp.bfloat16)
    h2 = jnp.maximum(jnp.dot(h1, w2, preferred_element_type=jnp.float32) + p["b2"], 0.0)
    return h2 @ p["w3"] + p["b3"]


if __name__ == "__main__":
    key = jax.random.PRNGKey(0)
    k_obs, k_act, k_par, k_obs2, k_act2 = jax.random.split(key, 5)

    OBS_DIM, ACT_DIM, HIDDEN = 17, 6, 256
    params = init_params(k_par, OBS_DIM, ACT_DIM, hidden=HIDDEN)

    # Small batch (single tile, grid of 1).
    B = 8
    obs = jax.random.normal(k_obs, (B, OBS_DIM), jnp.float32)
    act = jax.random.normal(k_act, (B, ACT_DIM), jnp.float32)
    q = jax.block_until_ready(soft_q_forward(obs, act, params))
    assert q.shape == (B, 1)

    q_ref = reference_forward_bf16(obs, act, params)
    err = float(jnp.max(jnp.abs(q - q_ref)))
    assert jnp.allclose(q, q_ref, atol=2e-2, rtol=2e-2), err
    q_f32 = reference_forward_f32(obs, act, params)
    assert float(jnp.max(jnp.abs(q - q_f32))) < 0.1  # bf16 weights vs full-f32 reference

    # Training-like batch: exercises the batch grid, padding, and the parallel axis.
    B2 = 300
    obs2 = jax.random.normal(k_obs2, (B2, OBS_DIM), jnp.float32)
    act2 = jax.random.normal(k_act2, (B2, ACT_DIM), jnp.float32)
    q2 = jax.block_until_ready(soft_q_forward(obs2, act2, params))
    assert q2.shape == (B2, 1)
    q2_ref = reference_forward_bf16(obs2, act2, params)
    err2 = float(jnp.max(jnp.abs(q2 - q2_ref)))
    assert jnp.allclose(q2, q2_ref, atol=2e-2, rtol=2e-2), err2

    print("KERNEL_OK")
</pallas_src>

<mosaic_0001>
module attributes {stable_mosaic.version = 11 : i64} {
  func.func @_soft_q_kernel(%arg0: i32, %arg1: memref<8x17xf32, #tpu.memory_space<vmem>>, %arg2: memref<8x6xf32, #tpu.memory_space<vmem>>, %arg3: memref<17x256xbf16, #tpu.memory_space<vmem>>, %arg4: memref<6x256xbf16, #tpu.memory_space<vmem>>, %arg5: memref<1x256xf32, #tpu.memory_space<vmem>>, %arg6: memref<256x256xbf16, #tpu.memory_space<vmem>>, %arg7: memref<1x256xf32, #tpu.memory_space<vmem>>, %arg8: memref<1x256xf32, #tpu.memory_space<vmem>>, %arg9: memref<1x1xf32, #tpu.memory_space<smem>>, %arg10: memref<8x1xf32, #tpu.memory_space<vmem>>) attributes {dimension_semantics = [#tpu.dimension_semantics<parallel>], iteration_bounds = array<i64: 1>, scalar_prefetch = 0 : i64, scratch_operands = 0 : i64, tpu.core_type = #tpu.core_type<tc>, window_params = [{transform_indices = @transform_0, window_bounds = array<i64: 8, 17>}, {transform_indices = @transform_1, window_bounds = array<i64: 8, 6>}, {pipeline_mode = #tpu.pipeline_mode<synchronous>, transform_indices = @transform_2, window_bounds = array<i64: 17, 256>}, {pipeline_mode = #tpu.pipeline_mode<synchronous>, transform_indices = @transform_3, window_bounds = array<i64: 6, 256>}, {pipeline_mode = #tpu.pipeline_mode<synchronous>, transform_indices = @transform_4, window_bounds = array<i64: 1, 256>}, {pipeline_mode = #tpu.pipeline_mode<synchronous>, transform_indices = @transform_5, window_bounds = array<i64: 256, 256>}, {pipeline_mode = #tpu.pipeline_mode<synchronous>, transform_indices = @transform_6, window_bounds = array<i64: 1, 256>}, {pipeline_mode = #tpu.pipeline_mode<synchronous>, transform_indices = @transform_7, window_bounds = array<i64: 1, 256>}, {transform_indices = @transform_8, window_bounds = array<i64: 1, 1>}, {transform_indices = @transform_9, window_bounds = array<i64: 8, 1>}]} {
    %c0 = arith.constant 0 : index
    %c0_0 = arith.constant 0 : index
    %0 = vector.load %arg1[%c0, %c0_0] : memref<8x17xf32, #tpu.memory_space<vmem>>, vector<8x17xf32>
    %1 = arith.truncf %0 : vector<8x17xf32> to vector<8x17xbf16>
    %c0_1 = arith.constant 0 : index
    %c0_2 = arith.constant 0 : index
    %2 = vector.load %arg2[%c0_1, %c0_2] : memref<8x6xf32, #tpu.memory_space<vmem>>, vector<8x6xf32>
    %3 = arith.truncf %2 : vector<8x6xf32> to vector<8x6xbf16>
    %c0_3 = arith.constant 0 : index
    %c0_4 = arith.constant 0 : index
    %4 = vector.load %arg3[%c0_3, %c0_4] : memref<17x256xbf16, #tpu.memory_space<vmem>>, vector<17x256xbf16>
    %cst = arith.constant dense<0.000000e+00> : vector<8x256xf32>
    %5 = tpu.matmul %1, %4, %cst {dimension_numbers = #tpu.dot_dimension_numbers<[1], [0], [0], [1], [0, 0, 1, 1], [], []>} : vector<8x17xbf16>, vector<17x256xbf16>, vector<8x256xf32> -> vector<8x256xf32>
    %c0_5 = arith.constant 0 : index
    %c0_6 = arith.constant 0 : index
    %6 = vector.load %arg4[%c0_5, %c0_6] : memref<6x256xbf16, #tpu.memory_space<vmem>>, vector<6x256xbf16>
    %cst_7 = arith.constant dense<0.000000e+00> : vector<8x256xf32>
    %7 = tpu.matmul %3, %6, %cst_7 {dimension_numbers = #tpu.dot_dimension_numbers<[1], [0], [0], [1], [0, 0, 1, 1], [], []>} : vector<8x6xbf16>, vector<6x256xbf16>, vector<8x256xf32> -> vector<8x256xf32>
    %8 = arith.addf %5, %7 : vector<8x256xf32>
    %c0_8 = arith.constant 0 : index
    %c0_9 = arith.constant 0 : index
    %9 = vector.load %arg5[%c0_8, %c0_9] : memref<1x256xf32, #tpu.memory_space<vmem>>, vector<1x256xf32>
    %10 = vector.broadcast %9 : vector<1x256xf32> to vector<8x256xf32>
    %11 = arith.addf %8, %10 : vector<8x256xf32>
    %cst_10 = arith.constant 0.000000e+00 : f32
    %12 = vector.broadcast %cst_10 : f32 to vector<8x256xf32>
    %13 = arith.maximumf %11, %12 : vector<8x256xf32>
    %14 = arith.truncf %13 : vector<8x256xf32> to vector<8x256xbf16>
    %c0_11 = arith.constant 0 : index
    %c0_12 = arith.constant 0 : index
    %15 = vector.load %arg6[%c0_11, %c0_12] : memref<256x256xbf16, #tpu.memory_space<vmem>>, vector<256x256xbf16>
    %cst_13 = arith.constant dense<0.000000e+00> : vector<8x256xf32>
    %16 = tpu.matmul %14, %15, %cst_13 {dimension_numbers = #tpu.dot_dimension_numbers<[1], [0], [0], [1], [0, 0, 1, 1], [], []>} : vector<8x256xbf16>, vector<256x256xbf16>, vector<8x256xf32> -> vector<8x256xf32>
    %c0_14 = arith.constant 0 : index
    %c0_15 = arith.constant 0 : index
    %17 = vector.load %arg7[%c0_14, %c0_15] : memref<1x256xf32, #tpu.memory_space<vmem>>, vector<1x256xf32>
    %18 = vector.broadcast %17 : vector<1x256xf32> to vector<8x256xf32>
    %19 = arith.addf %16, %18 : vector<8x256xf32>
    %cst_16 = arith.constant 0.000000e+00 : f32
    %20 = vector.broadcast %cst_16 : f32 to vector<8x256xf32>
    %21 = arith.maximumf %19, %20 : vector<8x256xf32>
    %c0_17 = arith.constant 0 : index
    %c0_18 = arith.constant 0 : index
    %22 = vector.load %arg8[%c0_17, %c0_18] : memref<1x256xf32, #tpu.memory_space<vmem>>, vector<1x256xf32>
    %23 = vector.broadcast %22 : vector<1x256xf32> to vector<8x256xf32>
    %24 = arith.mulf %21, %23 : vector<8x256xf32>
    %cst_19 = arith.constant dense<0.000000e+00> : vector<8xf32>
    %25 = vector.multi_reduction <add>, %24, %cst_19 [1] : vector<8x256xf32> to vector<8xf32>
    %26 = vector.shape_cast %25 : vector<8xf32> to vector<8x1xf32>
    %c0_20 = arith.constant 0 : index
    %c0_21 = arith.constant 0 : index
    %27 = memref.load %arg9[%c0_20, %c0_21] : memref<1x1xf32, #tpu.memory_space<smem>>
    %28 = vector.broadcast %27 : f32 to vector<8x1xf32>
    %29 = arith.addf %26, %28 : vector<8x1xf32>
    %c0_22 = arith.constant 0 : index
    %c0_23 = arith.constant 0 : index
    %30 = vector.load %arg10[%c0_22, %c0_23] : memref<8x1xf32, #tpu.memory_space<vmem>>, vector<8x1xf32>
    tpu.vector_store %arg10[%c0_22, %c0_23], %29 {strides = array<i32>} : memref<8x1xf32, #tpu.memory_space<vmem>>, vector<8x1xf32>,
    return
  }
  func.func @transform_0(%arg0: i32) -> (i32, i32) {
    %c0_i32 = arith.constant 0 : i32
    %c0_i32_0 = arith.constant 0 : i32
    return %arg0, %c0_i32 : i32, i32
  }
  func.func @transform_1(%arg0: i32) -> (i32, i32) {
    %c0_i32 = arith.constant 0 : i32
    %c0_i32_0 = arith.constant 0 : i32
    return %arg0, %c0_i32 : i32, i32
  }
  func.func @transform_2(%arg0: i32) -> (i32, i32) {
    %c0_i32 = arith.constant 0 : i32
    %c0_i32_0 = arith.constant 0 : i32
    %c0_i32_1 = arith.constant 0 : i32
    return %c0_i32, %c0_i32_0 : i32, i32
  }
  func.func @transform_3(%arg0: i32) -> (i32, i32) {
    %c0_i32 = arith.constant 0 : i32
    %c0_i32_0 = arith.constant 0 : i32
    %c0_i32_1 = arith.constant 0 : i32
    return %c0_i32, %c0_i32_0 : i32, i32
  }
  func.func @transform_4(%arg0: i32) -> (i32, i32) {
    %c0_i32 = arith.constant 0 : i32
    %c0_i32_0 = arith.constant 0 : i32
    %c0_i32_1 = arith.constant 0 : i32
    return %c0_i32, %c0_i32_0 : i32, i32
  }
  func.func @transform_5(%arg0: i32) -> (i32, i32) {
    %c0_i32 = arith.constant 0 : i32
    %c0_i32_0 = arith.constant 0 : i32
    %c0_i32_1 = arith.constant 0 : i32
    return %c0_i32, %c0_i32_0 : i32, i32
  }
  func.func @transform_6(%arg0: i32) -> (i32, i32) {
    %c0_i32 = arith.constant 0 : i32
    %c0_i32_0 = arith.constant 0 : i32
    %c0_i32_1 = arith.constant 0 : i32
    return %c0_i32, %c0_i32_0 : i32, i32
  }
  func.func @transform_7(%arg0: i32) -> (i32, i32) {
    %c0_i32 = arith.constant 0 : i32
    %c0_i32_0 = arith.constant 0 : i32
    %c0_i32_1 = arith.constant 0 : i32
    return %c0_i32, %c0_i32_0 : i32, i32
  }
  func.func @transform_8(%arg0: i32) -> (i32, i32) {
    %c0_i32 = arith.constant 0 : i32
    %c0_i32_0 = arith.constant 0 : i32
    %c0_i32_1 = arith.constant 0 : i32
    return %c0_i32, %c0_i32_0 : i32, i32
  }
  func.func @transform_9(%arg0: i32) -> (i32, i32) {
    %c0_i32 = arith.constant 0 : i32
    %c0_i32_0 = arith.constant 0 : i32
    return %arg0, %c0_i32 : i32, i32
  }
}

</mosaic_0001>

<llo_original>
// kernel: soft_q_forward.1
$region0: #{soft_q_forward.1}
  #allocation0 [shape = 'u32[]', space=smem, size = 0x4, offset = 0x4, fixed_abs, tag = 'smem constant byte address 0x4 - core index']
  #allocation1 [shape = 'u32[144,128]{1,0:T(1,128)}', space=vmem, size = 0x12000, scoped, tag = 'internal scratch']
  #allocation2 [shape = 'f32[1,1]{1,0:T(1,128)S(6)}', space=smem, size = 0x200, scoped, tag = 'scoped memory for soft_q_forward.1']
  %s0 = inlined_call_operand.vmem [shape: f32[8,17], index: 0, kind: input, shape index: {}]
  %s1 = inlined_call_operand.vmem [shape: f32[8,6], index: 1, kind: input, shape index: {}]
  %s2 = inlined_call_operand.vmem [shape: bf16[17,256], index: 2, kind: input, shape index: {}]
  %s3 = inlined_call_operand.vmem [shape: bf16[6,256], index: 3, kind: input, shape index: {}]
  %s4 = inlined_call_operand.vmem [shape: f32[1,256], index: 4, kind: input, shape index: {}]
  %s5 = inlined_call_operand.vmem [shape: bf16[256,256], index: 5, kind: input, shape index: {}]
  %s6 = inlined_call_operand.vmem [shape: f32[1,256], index: 6, kind: input, shape index: {}]
  %s7 = inlined_call_operand.vmem [shape: f32[1,256], index: 7, kind: input, shape index: {}]
  %s8 = inlined_call_operand.<no memory space> [shape: f32[1,1], index: 8, kind: input, shape index: {}]
  %s9 = inlined_call_operand.vmem [shape: f32[8,1], index: 9, kind: output, shape index: {}]
  %s10 = sld [smem:[#allocation0]]
  $region46: #{soft_q_forward.1} parent=0
    _
  %s12 = ssub.s32 1, %s10
  %s13 = scalar_select 0, %s12, %s10
  %14 = sst [smem:[#allocation2]] %s8
  // Predicated region
  $region2: #{soft_q_forward.1} parent=0 // pred_check
    _
  $region3: #{soft_q_forward.1} parent=0 // pred_check_branch
    %16 = sbr.rel (0) target = $region5
  $region4: #{soft_q_forward.1} parent=0 // pred_region
    _
  $region5: #{soft_q_forward.1} parent=0 // pred_fallthru
    _
  // Predicated region
  $region6: #{soft_q_forward.1} parent=0 // pred_check
    _
  $region7: #{soft_q_forward.1} parent=0 // pred_check_branch
    %18 = sbr.rel (0) target = $region9
  $region8: #{soft_q_forward.1} parent=0 // pred_region
    _
  $region9: #{soft_q_forward.1} parent=0 // pred_fallthru
    _
  // Predicated region
  $region10: #{soft_q_forward.1} parent=0 // pred_check
    _
  $region11: #{soft_q_forward.1} parent=0 // pred_check_branch
    %20 = sbr.rel (0) target = $region13
  $region12: #{soft_q_forward.1} parent=0 // pred_region
    _
  $region13: #{soft_q_forward.1} parent=0 // pred_fallthru
    _
  // Predicated region
  $region14: #{soft_q_forward.1} parent=0 // pred_check
    _
  $region15: #{soft_q_forward.1} parent=0 // pred_check_branch
    %22 = sbr.rel (0) target = $region17
  $region16: #{soft_q_forward.1} parent=0 // pred_region
    _
  $region17: #{soft_q_forward.1} parent=0 // pred_fallthru
    _
  // Predicated region
  $region18: #{soft_q_forward.1} parent=0 // pred_check
    _
  $region19: #{soft_q_forward.1} parent=0 // pred_check_branch
    %24 = sbr.rel (0) target = $region21
  $region20: #{soft_q_forward.1} parent=0 // pred_region
    _
  $region21: #{soft_q_forward.1} parent=0 // pred_fallthru
    _
  // Predicated region
  $region22: #{soft_q_forward.1} parent=0 // pred_check
    _
  $region23: #{soft_q_forward.1} parent=0 // pred_check_branch
    %26 = sbr.rel (0) target = $region25
  $region24: #{soft_q_forward.1} parent=0 // pred_region
    _
  $region25: #{soft_q_forward.1} parent=0 // pred_fallthru
    _
  // Predicated region
  $region26: #{soft_q_forward.1} parent=0 // pred_check
    _
  $region27: #{soft_q_forward.1} parent=0 // pred_check_branch
    %28 = sbr.rel (0) target = $region29
  $region28: #{soft_q_forward.1} parent=0 // pred_region
    _
  $region29: #{soft_q_forward.1} parent=0 // pred_fallthru
    _
  // Predicated region
  $region30: #{soft_q_forward.1} parent=0 // pred_check
    _
  $region31: #{soft_q_forward.1} parent=0 // pred_check_branch
    %30 = sbr.rel (0) target = $region33
  $region32: #{soft_q_forward.1} parent=0 // pred_region
    _
  $region33: #{soft_q_forward.1} parent=0 // pred_fallthru
    _
  // Predicated region
  $region34: #{soft_q_forward.1} parent=0 // pred_check
    _
  $region35: #{soft_q_forward.1} parent=0 // pred_check_branch
    %32 = sbr.rel (0) target = $region37
  $region36: #{soft_q_forward.1} parent=0 // pred_region
    _
  $region37: #{soft_q_forward.1} parent=0 // pred_fallthru
    _
  %v34 = vld [vmem:[%s0] sm:$0xff]
  %v35 = vpack.c.bf16 %v34, %v34
  %v36 = vld [vmem:[%s1] sm:$0xff]
  %v37 = vpack.c.bf16 %v36, %v36
  %v38 = vld [vmem:[%s2] sm:$0xff]
  %v39 = vld [vmem:[%s2 + $0x8] sm:$0xff]
  %v40 = vld [vmem:[%s2 + $0x10] sm:$0x11]
  %v41 = vld [vmem:[%s3] sm:$0x77]
  %v43 = vunpack.c.l.b16 %v41
  %v44 = vunpack.c.h.b16 %v41
  %v45 = vpack.c.b16 %v43, %v43
  %v46 = vpack.c.b16 %v44, %v44
  %vm47 = vcmask 48128
  %v49 = vsel %vm47, %v37, 0
  %vm51 = vcmask 1042432
  %v53 = vsel %vm51, %v45, 0
  %v56 = vsel %vm51, %v46, 0
  %58 = vmatprep.subr.bf16.mxu0 %v56
  %59 = vmatpush1.bf16.msra.mxu0 %v53
  %60 = vmatprep.subr.bf16.mxu0 0
  %61 = vmatpush1.bf16.msra.mxu0 0
  %62 = vmatprep.subr.bf16.mxu0 0
  %63 = vmatpush1.bf16.msra.mxu0 0
  %64 = vmatprep.subr.bf16.mxu0 0
  %65 = vmatpush1.bf16.msra.mxu0 0
  %66 = vmatprep.subr.bf16.mxu0 0
  %67 = vmatpush1.bf16.msra.mxu0 0
  %68 = vmatprep.subr.bf16.mxu0 0
  %69 = vmatpush1.bf16.msra.mxu0 0
  %70 = vmatprep.subr.bf16.mxu0 0
  %71 = vmatpush1.bf16.msra.mxu0 0
  %72 = vmatprep.subr.bf16.mxu0 0
  %73 = vmatpush1.bf16.msra.mxu0 0
  %74 = vmatprep.subr.bf16.mxu0 0
  %75 = vmatpush1.bf16.msra.mxu0 0
  %76 = vmatprep.subr.bf16.mxu0 0
  %77 = vmatpush1.bf16.msra.mxu0 0
  %78 = vmatprep.subr.bf16.mxu0 0
  %79 = vmatpush1.bf16.msra.mxu0 0
  %80 = vmatprep.subr.bf16.mxu0 0
  %81 = vmatpush1.bf16.msra.mxu0 0
  %82 = vmatprep.subr.bf16.mxu0 0
  %83 = vmatpush1.bf16.msra.mxu0 0
  %84 = vmatprep.subr.bf16.mxu0 0
  %85 = vmatpush1.bf16.msra.mxu0 0
  %86 = vmatprep.subr.bf16.mxu0 0
  %87 = vmatpush1.bf16.msra.mxu0 0
  %88 = vmatprep.subr.bf16.mxu0 0
  %89 = vmatpush1.bf16.msra.mxu0 0
  %90 = vmatprep.mubr.bf16.mxu0 0
  %91 = vmatmul.mubr.bf16.gmra.mrb[0].mxu0 %v49
  %v92 = vpop.f32.mrb[0].mxu0
  %v93 = vadd.f32 0.0, %v92
  %v94 = vpop.f32.mrb[0].mxu0
  %v95 = vadd.f32 0.0, %v94
  %v96 = vpop.f32.mrb[0].mxu0
  %v97 = vpop.f32.mrb[0].mxu0
  %98 = vdwg.mxu0
  %v102 = vunpack.c.l.b16 %v38
  %v103 = vunpack.c.h.b16 %v38
  %v104 = vunpack.c.l.b16 %v39
  %v105 = vunpack.c.h.b16 %v39
  %v106 = vunpack.c.l.b16 %v40
  %v107 = vunpack.c.h.b16 %v40
  %v108 = vpack.c.b16 %v104, %v102
  %v109 = vpack.c.b16 %v105, %v103
  %v110 = vpack.c.b16 %v106, %v106
  %v111 = vpack.c.b16 %v107, %v107
  %vm114 = vcmask 138240
  %v116 = vsel %vm114, %v35, 0
  %vm118 = vcmask 1040384
  %v119 = vsel 0, 4294967295, 65535
  %v120 = vsel %vm118, %v119, 0
  %v122 = vand.u32 %v110, %v120
  %v125 = vand.u32 %v111, %v120
  %127 = vmatprep.subr.bf16.mxu0 %v109
  %128 = vmatpush1.bf16.msra.mxu0 %v108
  %129 = vmatprep.subr.bf16.mxu0 %v125
  %130 = vmatpush1.bf16.msra.mxu0 %v122
  %131 = vmatprep.subr.bf16.mxu0 0
  %132 = vmatpush1.bf16.msra.mxu0 0
  %133 = vmatprep.subr.bf16.mxu0 0
  %134 = vmatpush1.bf16.msra.mxu0 0
  %135 = vmatprep.subr.bf16.mxu0 0
  %136 = vmatpush1.bf16.msra.mxu0 0
  %137 = vmatprep.subr.bf16.mxu0 0
  %138 = vmatpush1.bf16.msra.mxu0 0
  %139 = vmatprep.subr.bf16.mxu0 0
  %140 = vmatpush1.bf16.msra.mxu0 0
  %141 = vmatprep.subr.bf16.mxu0 0
  %142 = vmatpush1.bf16.msra.mxu0 0
  %143 = vmatprep.subr.bf16.mxu0 0
  %144 = vmatpush1.bf16.msra.mxu0 0
  %145 = vmatprep.subr.bf16.mxu0 0
  %146 = vmatpush1.bf16.msra.mxu0 0
  %147 = vmatprep.subr.bf16.mxu0 0
  %148 = vmatpush1.bf16.msra.mxu0 0
  %149 = vmatprep.subr.bf16.mxu0 0
  %150 = vmatpush1.bf16.msra.mxu0 0
  %151 = vmatprep.subr.bf16.mxu0 0
  %152 = vmatpush1.bf16.msra.mxu0 0
  %153 = vmatprep.subr.bf16.mxu0 0
  %154 = vmatpush1.bf16.msra.mxu0 0
  %155 = vmatprep.subr.bf16.mxu0 0
  %156 = vmatpush1.bf16.msra.mxu0 0
  %157 = vmatprep.subr.bf16.mxu0 0
  %158 = vmatpush1.bf16.msra.mxu0 0
  %159 = vmatprep.mubr.bf16.mxu0 0
  %160 = vmatmul.mubr.bf16.gmra.mrb[0].mxu0 %v116
  %v161 = vpop.f32.mrb[0].mxu0
  %v162 = vadd.f32 %v93, %v161
  %v163 = vpop.f32.mrb[0].mxu0
  %v164 = vadd.f32 %v95, %v163
  %v165 = vpop.f32.mrb[0].mxu0
  %v166 = vpop.f32.mrb[0].mxu0
  %167 = vdwg.mxu0
  %v168 = vld [vmem:[%s4] sm:$0x3]
  %v170 = vlaneseq
  %v171 = vshrl.u32 %v170, 7
  %v172 = vsub.s32 0, %v171
  %v173 = vrot.slane %v168, %v172
  %v174 = vlaneseq
  %v175 = vshrl.u32 %v174, 7
  %v176 = vsub.s32 1, %v175
  %v177 = vrot.slane %v168, %v176
  %v180 = vadd.f32 %v162, %v173
  %v181 = vadd.f32 %v164, %v177
  %v182 = vmax.f32 %v180, 0.0
  %v183 = vmax.f32 %v181, 0.0
  %v184 = vpack.c.bf16 %v182, %v182
  %v185 = vpack.c.bf16 %v183, %v183
  %v186 = vld [vmem:[%s5] sm:$0xff]
  %v187 = vld [vmem:[%s5 + $0x8] sm:$0xff]
  %v188 = vld [vmem:[%s5 + $0x10] sm:$0xff]
  %v189 = vld [vmem:[%s5 + $0x18] sm:$0xff]
  %v190 = vld [vmem:[%s5 + $0x20] sm:$0xff]
  %v191 = vld [vmem:[%s5 + $0x28] sm:$0xff]
  %v192 = vld [vmem:[%s5 + $0x30] sm:$0xff]
  %v193 = vld [vmem:[%s5 + $0x38] sm:$0xff]
  %v194 = vld [vmem:[%s5 + $0x40] sm:$0xff]
  %v195 = vld [vmem:[%s5 + $0x48] sm:$0xff]
  %v196 = vld [vmem:[%s5 + $0x50] sm:$0xff]
  %v197 = vld [vmem:[%s5 + $0x58] sm:$0xff]
  %v198 = vld [vmem:[%s5 + $0x60] sm:$0xff]
  %v199 = vld [vmem:[%s5 + $0x68] sm:$0xff]
  %v200 = vld [vmem:[%s5 + $0x70] sm:$0xff]
  %v201 = vld [vmem:[%s5 + $0x78] sm:$0xff]
  %v202 = vld [vmem:[%s5 + $0x80] sm:$0xff]
  %v203 = vld [vmem:[%s5 + $0x88] sm:$0xff]
  %v204 = vld [vmem:[%s5 + $0x90] sm:$0xff]
  %v205 = vld [vmem:[%s5 + $0x98] sm:$0xff]
  %v206 = vld [vmem:[%s5 + $0xa0] sm:$0xff]
  %v207 = vld [vmem:[%s5 + $0xa8] sm:$0xff]
  %v208 = vld [vmem:[%s5 + $0xb0] sm:$0xff]
  %v209 = vld [vmem:[%s5 + $0xb8] sm:$0xff]
  %v210 = vld [vmem:[%s5 + $0xc0] sm:$0xff]
  %v211 = vld [vmem:[%s5 + $0xc8] sm:$0xff]
  %v212 = vld [vmem:[%s5 + $0xd0] sm:$0xff]
  %v213 = vld [vmem:[%s5 + $0xd8] sm:$0xff]
  %v214 = vld [vmem:[%s5 + $0xe0] sm:$0xff]
  %v215 = vld [vmem:[%s5 + $0xe8] sm:$0xff]
  %v216 = vld [vmem:[%s5 + $0xf0] sm:$0xff]
  %v217 = vld [vmem:[%s5 + $0xf8] sm:$0xff]
  %v218 = vld [vmem:[%s6] sm:$0x3]
  %v220 = vlaneseq
  %v221 = vshrl.u32 %v220, 7
  %v222 = vsub.s32 0, %v221
  %v223 = vrot.slane %v218, %v222
  %v224 = vlaneseq
  %v225 = vshrl.u32 %v224, 7
  %v226 = vsub.s32 1, %v225
  %v227 = vrot.slane %v218, %v226
  %v262 = vunpack.c.l.b16 %v186
  %v263 = vunpack.c.h.b16 %v186
  %v264 = vunpack.c.l.b16 %v187
  %v265 = vunpack.c.h.b16 %v187
  %v266 = vunpack.c.l.b16 %v188
  %v267 = vunpack.c.h.b16 %v188
  %v268 = vunpack.c.l.b16 %v189
  %v269 = vunpack.c.h.b16 %v189
  %v270 = vunpack.c.l.b16 %v190
  %v271 = vunpack.c.h.b16 %v190
  %v272 = vunpack.c.l.b16 %v191
  %v273 = vunpack.c.h.b16 %v191
  %v274 = vunpack.c.l.b16 %v192
  %v275 = vunpack.c.h.b16 %v192
  %v276 = vunpack.c.l.b16 %v193
  %v277 = vunpack.c.h.b16 %v193
  %v278 = vunpack.c.l.b16 %v194
  %v279 = vunpack.c.h.b16 %v194
  %v280 = vunpack.c.l.b16 %v195
  %v281 = vunpack.c.h.b16 %v195
  %v282 = vunpack.c.l.b16 %v196
  %v283 = vunpack.c.h.b16 %v196
  %v284 = vunpack.c.l.b16 %v197
  %v285 = vunpack.c.h.b16 %v197
  %v286 = vunpack.c.l.b16 %v198
  %v287 = vunpack.c.h.b16 %v198
  %v288 = vunpack.c.l.b16 %v199
  %v289 = vunpack.c.h.b16 %v199
  %v290 = vunpack.c.l.b16 %v200
  %v291 = vunpack.c.h.b16 %v200
  %v292 = vunpack.c.l.b16 %v201
  %v293 = vunpack.c.h.b16 %v201
  %v294 = vunpack.c.l.b16 %v202
  %v295 = vunpack.c.h.b16 %v202
  %v296 = vunpack.c.l.b16 %v203
  %v297 = vunpack.c.h.b16 %v203
  %v298 = vunpack.c.l.b16 %v204
  %v299 = vunpack.c.h.b16 %v204
  %v300 = vunpack.c.l.b16 %v205
  %v301 = vunpack.c.h.b16 %v205
  %v302 = vunpack.c.l.b16 %v206
  %v303 = vunpack.c.h.b16 %v206
  %v304 = vunpack.c.l.b16 %v207
  %v305 = vunpack.c.h.b16 %v207
  %v306 = vunpack.c.l.b16 %v208
  %v307 = vunpack.c.h.b16 %v208
  %v308 = vunpack.c.l.b16 %v209
  %v309 = vunpack.c.h.b16 %v209
  %v310 = vunpack.c.l.b16 %v210
  %v311 = vunpack.c.h.b16 %v210
  %v312 = vunpack.c.l.b16 %v211
  %v313 = vunpack.c.h.b16 %v211
  %v314 = vunpack.c.l.b16 %v212
  %v315 = vunpack.c.h.b16 %v212
  %v316 = vunpack.c.l.b16 %v213
  %v317 = vunpack.c.h.b16 %v213
  %v318 = vunpack.c.l.b16 %v214
  %v319 = vunpack.c.h.b16 %v214
  %v320 = vunpack.c.l.b16 %v215
  %v321 = vunpack.c.h.b16 %v215
  %v322 = vunpack.c.l.b16 %v216
  %v323 = vunpack.c.h.b16 %v216
  %v324 = vunpack.c.l.b16 %v217
  %v325 = vunpack.c.h.b16 %v217
  %v326 = vpack.c.b16 %v264, %v262
  %v327 = vpack.c.b16 %v265, %v263
  %v328 = vpack.c.b16 %v268, %v266
  %v329 = vpack.c.b16 %v269, %v267
  %v330 = vpack.c.b16 %v272, %v270
  %v331 = vpack.c.b16 %v273, %v271
  %v332 = vpack.c.b16 %v276, %v274
  %v333 = vpack.c.b16 %v277, %v275
  %v334 = vpack.c.b16 %v280, %v278
  %v335 = vpack.c.b16 %v281, %v279
  %v336 = vpack.c.b16 %v284, %v282
  %v337 = vpack.c.b16 %v285, %v283
  %v338 = vpack.c.b16 %v288, %v286
  %v339 = vpack.c.b16 %v289, %v287
  %v340 = vpack.c.b16 %v292, %v290
  %v341 = vpack.c.b16 %v293, %v291
  %v342 = vpack.c.b16 %v296, %v294
  %v343 = vpack.c.b16 %v297, %v295
  %v344 = vpack.c.b16 %v300, %v298
  %v345 = vpack.c.b16 %v301, %v299
  %v346 = vpack.c.b16 %v304, %v302
  %v347 = vpack.c.b16 %v305, %v303
  %v348 = vpack.c.b16 %v308, %v306
  %v349 = vpack.c.b16 %v309, %v307
  %v350 = vpack.c.b16 %v312, %v310
  %v351 = vpack.c.b16 %v313, %v311
  %v352 = vpack.c.b16 %v316, %v314
  %v353 = vpack.c.b16 %v317, %v315
  %v354 = vpack.c.b16 %v320, %v318
  %v355 = vpack.c.b16 %v321, %v319
  %v356 = vpack.c.b16 %v324, %v322
  %v357 = vpack.c.b16 %v325, %v323
  %390 = vmatprep.subr.bf16.mxu0 %v327
  %391 = vmatpush1.bf16.msra.mxu0 %v326
  %392 = vmatprep.subr.bf16.mxu0 %v329
  %393 = vmatpush1.bf16.msra.mxu0 %v328
  %394 = vmatprep.subr.bf16.mxu0 %v331
  %395 = vmatpush1.bf16.msra.mxu0 %v330
  %396 = vmatprep.subr.bf16.mxu0 %v333
  %397 = vmatpush1.bf16.msra.mxu0 %v332
  %398 = vmatprep.subr.bf16.mxu0 %v335
  %399 = vmatpush1.bf16.msra.mxu0 %v334
  %400 = vmatprep.subr.bf16.mxu0 %v337
  %401 = vmatpush1.bf16.msra.mxu0 %v336
  %402 = vmatprep.subr.bf16.mxu0 %v339
  %403 = vmatpush1.bf16.msra.mxu0 %v338
  %404 = vmatprep.subr.bf16.mxu0 %v341
  %405 = vmatpush1.bf16.msra.mxu0 %v340
  %406 = vmatprep.subr.bf16.mxu0 %v343
  %407 = vmatpush1.bf16.msra.mxu0 %v342
  %408 = vmatprep.subr.bf16.mxu0 %v345
  %409 = vmatpush1.bf16.msra.mxu0 %v344
  %410 = vmatprep.subr.bf16.mxu0 %v347
  %411 = vmatpush1.bf16.msra.mxu0 %v346
  %412 = vmatprep.subr.bf16.mxu0 %v349
  %413 = vmatpush1.bf16.msra.mxu0 %v348
  %414 = vmatprep.subr.bf16.mxu0 %v351
  %415 = vmatpush1.bf16.msra.mxu0 %v350
  %416 = vmatprep.subr.bf16.mxu0 %v353
  %417 = vmatpush1.bf16.msra.mxu0 %v352
  %418 = vmatprep.subr.bf16.mxu0 %v355
  %419 = vmatpush1.bf16.msra.mxu0 %v354
  %420 = vmatprep.subr.bf16.mxu0 %v357
  %421 = vmatpush1.bf16.msra.mxu0 %v356
  %422 = vmatprep.mubr.bf16.mxu0 %v185
  %423 = vmatmul.mubr.bf16.gmra.mrb[0].mxu0 %v184
  %v424 = vpop.f32.mrb[0].mxu0
  %v425 = vadd.f32 %v223, %v424
  %v426 = vpop.f32.mrb[0].mxu0
  %v427 = vadd.f32 %v227, %v426
  %v428 = vpop.f32.mrb[0].mxu0
  %v429 = vpop.f32.mrb[0].mxu0
  %430 = vdwg.mxu0
  %v431 = vmax.f32 %v425, 0.0
  %v432 = vmax.f32 %v427, 0.0
  %v433 = vld [vmem:[%s7] sm:$0x3]
  %v435 = vlaneseq
  %v436 = vshrl.u32 %v435, 7
  %v437 = vsub.s32 0, %v436
  %v438 = vrot.slane %v433, %v437
  %v439 = vlaneseq
  %v440 = vshrl.u32 %v439, 7
  %v441 = vsub.s32 1, %v440
  %v442 = vrot.slane %v433, %v441
  %v445 = vmul.f32 %v431, %v438
  %v446 = vmul.f32 %v432, %v442
  %v447 = vadd.f32 %v445, %v446
  %448 = vadd.xlane.f32.xlu0 %v447
  %v449 = vpop.xlane.xlu0 %448
  %s450 = sld [smem:[#allocation2]]
  %v451 = vstv %s450
  %v452 = vadd.f32 %v449, %v451
  %vm453 = vcmask 7168
  %454 = vst.msk [vmem:[%s9] sm:$0xff] %vm453, %v452
  // Predicated region
  $region38: #{soft_q_forward.1} parent=0 // pred_check
    _
  $region39: #{soft_q_forward.1} parent=0 // pred_check_branch
    %456 = sbr.rel (0) target = $region41
  $region40: #{soft_q_forward.1} parent=0 // pred_region
    _
  $region41: #{soft_q_forward.1} parent=0 // pred_fallthru
    _
  // Predicated region
  $region42: #{soft_q_forward.1} parent=0 // pred_check
    _
  $region43: #{soft_q_forward.1} parent=0 // pred_check_branch
    %458 = sbr.rel (0) target = $region45
  $region44: #{soft_q_forward.1} parent=0 // pred_region
    _
  $region45: #{soft_q_forward.1} parent=0 // pred_fallthru
    _

</llo_original>
